<compile_context>
chip_gen: v5e
topology: v5e:2x2
jax: 0.10.0
libtpu: 0.0.40
codegen_flags: <defaults>
</compile_context>

<pallas_src>
import math
from typing import Dict, List, Tuple, Union

import jax
import jax.numpy as jnp
from jax.experimental import pallas as pl
from jax.experimental.pallas import tpu as pltpu


def _round_up(x: int, m: int) -> int:
    return ((x + m - 1) // m) * m


# ---------------------------------------------------------------------------
# Fused Pallas kernel: per-tile bias-free linear projection on the MXU.
# ---------------------------------------------------------------------------
def _fused_linear_kernel(tile_key_ref, x_ref, wt_ref, o_ref):
    # tile_key_ref: SMEM int32[num_tiles] (consumed by the weight index_map)
    # x_ref : [tm, F_pad]        rows of the current tile (zero-padded in F)
    # wt_ref: [F_pad, out_pad]   transposed, zero-padded weight of this tile's key
    # o_ref : [tm, out_pad]      lane-dense output tile
    o_ref[...] = jnp.dot(
        x_ref[...], wt_ref[...], preferred_element_type=jnp.float32
    ).astype(o_ref.dtype)


def fused_linear_align(x_pad: jnp.ndarray, wt_stack: jnp.ndarray,
                       tile_key_idx: jnp.ndarray, tm: int) -> jnp.ndarray:
    """One fused call over all keys.

    x_pad:        [M, F_pad]            (M multiple of tm, zero-padded rows/features)
    wt_stack:     [G, F_pad, out_pad]   (pre-transposed, zero-padded weights)
    tile_key_idx: [M // tm] int32       (key/group index per row tile)
    returns:      [M, out_pad]
    """
    M, F_pad = x_pad.shape
    G, _, out_pad = wt_stack.shape
    num_tiles = M // tm

    cost = pl.CostEstimate(
        flops=2 * M * F_pad * out_pad,
        transcendentals=0,
        bytes_accessed=4 * (M * F_pad + G * F_pad * out_pad + M * out_pad),
    )

    return pl.pallas_call(
        _fused_linear_kernel,
        out_shape=jax.ShapeDtypeStruct((M, out_pad), x_pad.dtype),
        grid_spec=pltpu.PrefetchScalarGridSpec(
            num_scalar_prefetch=1,
            grid=(num_tiles,),
            in_specs=[
                # Row tile of the concatenated input.
                pl.BlockSpec((tm, F_pad), lambda i, tk: (i, 0)),
                # Per-tile weight selected via scalar prefetch (leading dim squeezed).
                pl.BlockSpec((None, F_pad, out_pad), lambda i, tk: (tk[i], 0, 0)),
            ],
            out_specs=pl.BlockSpec((tm, out_pad), lambda i, tk: (i, 0)),
        ),
        compiler_params=pltpu.CompilerParams(
            dimension_semantics=("parallel",),
        ),
        cost_estimate=cost,
    )(tile_key_idx, x_pad, wt_stack)


# ---------------------------------------------------------------------------
# LinearAlign module equivalent.
# ---------------------------------------------------------------------------
Key = Union[str, Tuple[str, str, str]]


def key2str(key: Key) -> str:
    key = "__".join(key) if isinstance(key, tuple) else key
    return key.replace(" ", "_").replace("-", "_").replace(":", "_")


class LinearAlign:
    """JAX/Pallas port of torch_geometric's LinearAlign (bias-free per-key Linear)."""

    # Keep double-buffered tiles comfortably under the 32 MiB scoped-VMEM
    # default (safe on v5e/v6e 128 MiB and v7x 64 MiB physical VMEM).
    _VMEM_BUDGET_BYTES = 24 * 1024 * 1024

    def __init__(self, keys: List[Key], out_channels: int,
                 in_channels: Dict[Key, int], rng_key: jax.Array):
        self.out_channels = out_channels
        self.keys = list(keys)
        self.key_index = {key2str(k): i for i, k in enumerate(self.keys)}

        max_f = max(in_channels[k] for k in self.keys)
        self.f_pad = _round_up(max_f, 128)          # lane-dense contraction dim
        self.out_pad = _round_up(out_channels, 128)  # lane-dense output dim

        self.weights: Dict[str, jnp.ndarray] = {}   # PyTorch [out, in] layout (reference)
        wt_blocks = []
        subkeys = jax.random.split(rng_key, len(self.keys))
        for k, sk in zip(self.keys, subkeys):
            fan_in = in_channels[k]
            bound = 1.0 / math.sqrt(float(fan_in))  # PyTorch Linear default-ish init
            w = jax.random.uniform(sk, (out_channels, fan_in), dtype=jnp.float32,
                                   minval=-bound, maxval=bound)
            self.weights[key2str(k)] = w
            # Pre-transpose + zero-pad once at init (no per-call transpose traffic).
            wt = jnp.zeros((self.f_pad, self.out_pad), jnp.float32)
            wt = wt.at[:fan_in, :out_channels].set(w.T)
            wt_blocks.append(wt)
        self.wt_stack = jnp.stack(wt_blocks, axis=0)  # [G, F_pad, out_pad]

    # -- row-tile selection against a VMEM budget -------------------------
    def _pick_tm(self, max_rows: int) -> int:
        fixed = 2 * 4 * self.f_pad * self.out_pad          # double-buffered weight tile
        per_row = 2 * 4 * (self.f_pad + self.out_pad)      # double-buffered x + out rows
        tm = max(8, (self._VMEM_BUDGET_BYTES - fixed) // per_row)
        tm = min(int(tm), 1024, _round_up(max_rows, 8))
        tm = max(8, (tm // 8) * 8)
        return int(tm)

    def __call__(self, x_dict: Dict[Key, jnp.ndarray]) -> Dict[Key, jnp.ndarray]:
        items = list(x_dict.items())
        if not items:
            return {}

        max_rows = max(int(x.shape[0]) for _, x in items)
        tm = self._pick_tm(max_rows)

        x_blocks = []
        tile_ids: List[int] = []
        spans = []  # (key, start_row, num_rows)
        row = 0
        for key, x in items:
            n, f = x.shape
            g = self.key_index[key2str(key)]
            n_tiles = -(-n // tm)
            n_padded = n_tiles * tm
            xp = jnp.zeros((n_padded, self.f_pad), x.dtype)
            xp = xp.at[:n, :f].set(x)          # zero-pad rows and features (harmless)
            x_blocks.append(xp)
            tile_ids.extend([g] * n_tiles)
            spans.append((key, row, n))
            row += n_padded

        x_pad = jnp.concatenate(x_blocks, axis=0)          # [M, F_pad]
        tile_key_idx = jnp.asarray(tile_ids, dtype=jnp.int32)

        out_full = fused_linear_align(x_pad, self.wt_stack, tile_key_idx, tm)

        return {key: out_full[start:start + n, :self.out_channels]
                for key, start, n in spans}

    def __repr__(self) -> str:
        return (f"{self.__class__.__name__}(num_relations={len(self.weights)}, "
                f"out_channels={self.out_channels})")


# ---------------------------------------------------------------------------
# Demo / self-test.
# ---------------------------------------------------------------------------
if __name__ == "__main__":
    rng = jax.random.PRNGKey(0)

    out_channels = 32
    keys: List[Key] = ["paper", "author", ("paper", "cites", "paper")]
    in_channels = {"paper": 16, "author": 24, ("paper", "cites", "paper"): 8}
    num_rows = {"paper": 16, "author": 8, ("paper", "cites", "paper"): 24}

    rng, kinit, *kxs = jax.random.split(rng, 2 + len(keys))
    x_dict = {
        k: jax.random.normal(kx, (num_rows[k], in_channels[k]), dtype=jnp.float32)
        for k, kx in zip(keys, kxs)
    }

    module = LinearAlign(keys, out_channels, in_channels, kinit)
    out_dict = module(x_dict)

    # NOTE: x_dict/out_dict mix str and tuple keys, which breaks pytree
    # dict-key sorting — block on the values directly (no tree_map).
    for v in out_dict.values():
        jax.block_until_ready(v)

    # Correctness check against a plain-JAX reference (x @ W.T).
    for k, x in x_dict.items():
        ref = x @ module.weights[key2str(k)].T
        got = out_dict[k]
        assert got.shape == (num_rows[k], out_channels), got.shape
        assert got.dtype == jnp.float32
        assert jnp.allclose(got, ref, atol=1e-4, rtol=1e-4), f"mismatch for {k}"

    print("KERNEL_OK")
</pallas_src>

<mosaic_0001>
module attributes {stable_mosaic.version = 11 : i64} {
  func.func @_fused_linear_kernel(%arg0: i32, %arg1: memref<3xi32, #tpu.memory_space<smem>>, %arg2: memref<24x128xf32, #tpu.memory_space<vmem>>, %arg3: memref<1x128x128xf32, #tpu.memory_space<vmem>>, %arg4: memref<24x128xf32, #tpu.memory_space<vmem>>) attributes {dimension_semantics = [#tpu.dimension_semantics<parallel>], iteration_bounds = array<i64: 3>, scalar_prefetch = 1 : i64, scratch_operands = 0 : i64, tpu.core_type = #tpu.core_type<tc>, window_params = [{transform_indices = @transform_0, window_bounds = array<i64: 24, 128>}, {transform_indices = @transform_1, window_bounds = array<i64: 1, 128, 128>}, {transform_indices = @transform_2, window_bounds = array<i64: 24, 128>}]} {
    %c0 = arith.constant 0 : index
    %c0_0 = arith.constant 0 : index
    %0 = vector.load %arg2[%c0, %c0_0] : memref<24x128xf32, #tpu.memory_space<vmem>>, vector<24x128xf32>
    %c0_1 = arith.constant 0 : index
    %c0_2 = arith.constant 0 : index
    %c0_3 = arith.constant 0 : index
    %1 = vector.load %arg3[%c0_1, %c0_2, %c0_3] : memref<1x128x128xf32, #tpu.memory_space<vmem>>, vector<1x128x128xf32>
    %2 = vector.shape_cast %1 : vector<1x128x128xf32> to vector<128x128xf32>
    %cst = arith.constant dense<0.000000e+00> : vector<24x128xf32>
    %3 = tpu.matmul %0, %2, %cst {dimension_numbers = #tpu.dot_dimension_numbers<[1], [0], [0], [1], [0, 0, 1, 1], [], []>} : vector<24x128xf32>, vector<128x128xf32>, vector<24x128xf32> -> vector<24x128xf32>
    %c0_4 = arith.constant 0 : index
    %c0_5 = arith.constant 0 : index
    %4 = vector.load %arg4[%c0_4, %c0_5] : memref<24x128xf32, #tpu.memory_space<vmem>>, vector<24x128xf32>
    tpu.vector_store %arg4[%c0_4, %c0_5], %3 {strides = array<i32>} : memref<24x128xf32, #tpu.memory_space<vmem>>, vector<24x128xf32>,
    return
  }
  func.func @transform_0(%arg0: i32, %arg1: memref<3xi32, #tpu.memory_space<smem>>) -> (i32, i32) {
    %c0_i32 = arith.constant 0 : i32
    %c0_i32_0 = arith.constant 0 : i32
    return %arg0, %c0_i32 : i32, i32
  }
  func.func @transform_1(%arg0: i32, %arg1: memref<3xi32, #tpu.memory_space<smem>>) -> (i32, i32, i32) {
    %0 = arith.index_cast %arg0 : i32 to index
    %1 = memref.load %arg1[%0] : memref<3xi32, #tpu.memory_space<smem>>
    %c0_i32 = arith.constant 0 : i32
    %c0_i32_0 = arith.constant 0 : i32
    %c0_i32_1 = arith.constant 0 : i32
    return %1, %c0_i32, %c0_i32_0 : i32, i32, i32
  }
  func.func @transform_2(%arg0: i32, %arg1: memref<3xi32, #tpu.memory_space<smem>>) -> (i32, i32) {
    %c0_i32 = arith.constant 0 : i32
    %c0_i32_0 = arith.constant 0 : i32
    return %arg0, %c0_i32 : i32, i32
  }
}

</mosaic_0001>

<llo_original>
// kernel: tpu_custom_call.1
$region0: #{tpu_custom_call.1}
  #allocation0 [shape = 'u32[]', space=smem, size = 0x4, offset = 0x4, fixed_abs, tag = 'smem constant byte address 0x4 - core index']
  #allocation1 [shape = 'u32[72,128]{1,0:T(1,128)}', space=vmem, size = 0x9000, scoped, tag = 'internal scratch']
  #allocation2 [shape = 's32[1]{0}', space=sflag, size = 0x4, scoped, tag = 'scoped memory for tpu_custom_call.1']
  #allocation3 [shape = 'u8[512]{0}', space=smem, size = 0x200, scoped, tag = 'prefetched SMEM operand 0']
  %s0 = inlined_call_operand.hbm [shape: s32[3], index: 0, kind: input, shape index: {}]
  %s1 = inlined_call_operand.hbm [shape: f32[72,128], index: 1, kind: input, shape index: {}]
  %s2 = inlined_call_operand.hbm [shape: f32[3,128,128], index: 2, kind: input, shape index: {}]
  %s3 = inlined_call_operand.hbm [shape: f32[72,128], index: 3, kind: output, shape index: {}]
  %s4 = sld [smem:[#allocation0]]
  $region49: #{tpu_custom_call.1} parent=0
    _
  %s6 = ssub.s32 1, %s4
  %s7 = scalar_select 0, %s6, %s4
  %s9 = sshll.u32 %s0, 4
  %s10 = int_to_ptr.hbm [resolvable:$true] %s9
  %12 = dma.hbm_to_smem %s10, 16, [#allocation3], [#allocation2]
  %14 = dma.done [#allocation2], 16
  %15 = sfence
  $region1: #{tpu_custom_call.1} parent=0
    #allocation4 [shape = 'u8[24576]{0}', space=vmem, size = 0x6000, scoped, tag = 'input window, operand 1']
    #allocation5 [shape = 's32[2]{0}', space=sflag, size = 0x8, scoped, tag = 'scoped memory for tpu_custom_call.1']
    #allocation6 [shape = 's32[2]{0}', space=sflag, size = 0x8, scoped, tag = 'scoped memory for tpu_custom_call.1']
    #allocation7 [shape = 'u8[131072]{0}', space=vmem, size = 0x20000, scoped, tag = 'input window, operand 2']
    #allocation8 [shape = 's32[2]{0}', space=sflag, size = 0x8, scoped, tag = 'scoped memory for tpu_custom_call.1']
    #allocation9 [shape = 'u8[24576]{0}', space=vmem, size = 0x6000, scoped, tag = 'output window, operand 0']
    %16 = vsyncpa [#allocation5], 0
    %s17 = scalar_lea.sflag [#allocation5], 1
    %18 = vsyncpa %s17, 0
    %19 = vsyncpa [#allocation8], 0
    %s20 = scalar_lea.sflag [#allocation8], 1
    %21 = vsyncpa %s20, 0
    %22 = vsyncpa [#allocation6], 0
    %s23 = scalar_lea.sflag [#allocation6], 1
    %24 = vsyncpa %s23, 0
    loop: start=0, step=1, limit=5
    $region2: #{tpu_custom_call.1} parent=1 // loop_pre_header
      _
    $region3: #{tpu_custom_call.1} parent=1 // loop_header
      %s26 = sphi 0, %s30
      %p27 = scmp.ge.s32.totalorder %s26, 5
      %s36 = sphi 0, %s38
      %s39 = sphi 0, %s36
      %s40 = sphi 0, %s39
      %s56 = sphi 0, %s40
      %s64 = sphi 0, %s66
      %s67 = sphi 0, %s64
      %s68 = sphi 0, %s67
      %s84 = sphi 0, %s68
      %s90 = sphi 0, %s92
      %s93 = sphi 0, %s90
      %s94 = sphi 0, %s93
      %s110 = sphi 0, %s94
    $region4: #{tpu_custom_call.1} parent=1 // loop_header_branch
      %29 = sbr.rel (%p27) target = $region8
    $region5: #{tpu_custom_call.1} parent=1 // loop_body
      %s31 = ssub.s32 %s26, 1
      %s32 = ssub.s32 %s26, 2
      %s33 = sadd.s32 %s26, 1
      %s34 = ssub.s32 %s26, %s33
      %p35 = scmp.eq.s32.totalorder %s34, 0
      %s37 = sadd.s32 %s36, 1
      %s38 = scalar_select %p35, %s36, %s37
      %p41 = pneg %p35
      %p42 = scmp.eq.s32.totalorder %s26, 2
      %p43 = por %p41, %p42
      %p44 = scmp.ne.s32.totalorder %s36, %s39
      %p45 = scmp.eq.s32.totalorder %s26, 0
      %p46 = por %p44, %p45
      %p47 = scmp.ne.s32.totalorder %s36, %s39
      %p48 = scmp.eq.s32.totalorder %s31, 2
      %p49 = por %p47, %p48
      %p50 = scmp.ne.s32.totalorder %s39, %s40
      %p51 = scmp.eq.s32.totalorder %s31, 0
      %p52 = por %p50, %p51
      %p53 = scmp.ne.s32.totalorder %s39, %s40
      %p54 = scmp.eq.s32.totalorder %s32, 2
      %p55 = por %p53, %p54
      %p57 = scmp.ne.s32.totalorder %s40, %s56
      %p58 = scmp.eq.s32.totalorder %s32, 0
      %p59 = por %p57, %p58
      %s60 = sld [smem:[#allocation3 + %s26]]
      %s61 = sld [smem:[#allocation3 + %s33]]
      %s62 = ssub.s32 %s60, %s61
      %p63 = scmp.eq.s32.totalorder %s62, 0
      %s65 = sadd.s32 %s64, 1
      %s66 = scalar_select %p63, %s64, %s65
      %p69 = pneg %p63
      %p70 = scmp.eq.s32.totalorder %s26, 2
      %p71 = por %p69, %p70
      %p72 = scmp.ne.s32.totalorder %s64, %s67
      %p73 = scmp.eq.s32.totalorder %s26, 0
      %p74 = por %p72, %p73
      %p75 = scmp.ne.s32.totalorder %s64, %s67
      %p76 = scmp.eq.s32.totalorder %s31, 2
      %p77 = por %p75, %p76
      %p78 = scmp.ne.s32.totalorder %s67, %s68
      %p79 = scmp.eq.s32.totalorder %s31, 0
      %p80 = por %p78, %p79
      %p81 = scmp.ne.s32.totalorder %s67, %s68
      %p82 = scmp.eq.s32.totalorder %s32, 2
      %p83 = por %p81, %p82
      %p85 = scmp.ne.s32.totalorder %s68, %s84
      %p86 = scmp.eq.s32.totalorder %s32, 0
      %p87 = por %p85, %p86
      %s88 = ssub.s32 %s26, %s33
      %p89 = scmp.eq.s32.totalorder %s88, 0
      %s91 = sadd.s32 %s90, 1
      %s92 = scalar_select %p89, %s90, %s91
      %p95 = pneg %p89
      %p96 = scmp.eq.s32.totalorder %s26, 2
      %p97 = por %p95, %p96
      %p98 = scmp.ne.s32.totalorder %s90, %s93
      %p99 = scmp.eq.s32.totalorder %s26, 0
      %p100 = por %p98, %p99
      %p101 = scmp.ne.s32.totalorder %s90, %s93
      %p102 = scmp.eq.s32.totalorder %s31, 2
      %p103 = por %p101, %p102
      %p104 = scmp.ne.s32.totalorder %s93, %s94
      %p105 = scmp.eq.s32.totalorder %s31, 0
      %p106 = por %p104, %p105
      %p107 = scmp.ne.s32.totalorder %s93, %s94
      %p108 = scmp.eq.s32.totalorder %s32, 2
      %p109 = por %p107, %p108
      %p111 = scmp.ne.s32.totalorder %s94, %s110
      %p112 = scmp.eq.s32.totalorder %s32, 0
      %p113 = por %p111, %p112
      %p114 = scmp.le.s32.totalorder 1, %s26
      %p115 = scmp.lt.s32.totalorder %s26, 4
      %p116 = pnand %p114, %p115
      %p117 = pneg %p116
      // Predicated region
      $region9: #{tpu_custom_call.1} parent=5 // pred_check
        _
      $region10: #{tpu_custom_call.1} parent=5 // pred_check_branch
        %119 = sbr.rel (%p116) target = $region12
      $region11: #{tpu_custom_call.1} parent=5 // pred_region
        %s120 = ssub.s32 %s26, 1
      $region12: #{tpu_custom_call.1} parent=5 // pred_fallthru
        _
      %p121 = scmp.lt.s32.totalorder %s26, 3
      // Predicated region
      $region13: #{tpu_custom_call.1} parent=5 // pred_check
        %p122 = pneg %p121
      $region14: #{tpu_custom_call.1} parent=5 // pred_check_branch
        %124 = sbr.rel (%p122) target = $region16
      $region15: #{tpu_custom_call.1} parent=5 // pred_region
        // Predicated region
        $region17: #{tpu_custom_call.1} parent=15 // pred_check
          %p125 = pneg %p46
        $region18: #{tpu_custom_call.1} parent=15 // pred_check_branch
          %127 = sbr.rel (%p125) target = $region20
        $region19: #{tpu_custom_call.1} parent=15 // pred_region
          %s128 = sand.u32 %s36, 1
          %s129 = scalar_lea.sflag [#allocation5], %s128
          %s130 = sand.u32 %s36, 1
          %s131 = smul.addr %s130, 24
          %s132 = scalar_lea.vmem [#allocation4], %s131
          %s133 = smul.u32 3, %s26
          %135 = vsyncadd %s129, 0
          %s136 = smul.addr %s133, 8
          %s137 = scalar_lea.hbm %s1, %s136
          %s138 = sshll.u32 %s137, 4
          %s139 = int_to_ptr.hbm [resolvable:$true] %s138
          %s140 = sshll.u32 %s132, 4
          %s141 = int_to_ptr.vmem [resolvable:$true] %s140
          %146 = dma.hbm_to_vmem [thread:$0]  %s139, 384, %s141, %s129, 128, 128, 8
        $region20: #{tpu_custom_call.1} parent=15 // pred_fallthru
          _
        // Predicated region
        $region21: #{tpu_custom_call.1} parent=15 // pred_check
          %p147 = pneg %p74
        $region22: #{tpu_custom_call.1} parent=15 // pred_check_branch
          %149 = sbr.rel (%p147) target = $region24
        $region23: #{tpu_custom_call.1} parent=15 // pred_region
          %s150 = sand.u32 %s64, 1
          %s151 = scalar_lea.sflag [#allocation8], %s150
          %s152 = sand.u32 %s64, 1
          %s153 = smul.addr %s152, 128
          %s154 = scalar_lea.vmem [#allocation7], %s153
          %s155 = sld [smem:[#allocation3 + %s26]]
          %157 = vsyncadd %s151, 0
          %s158 = smul.addr %s155, 16
          %s159 = smul.addr %s158, 8
          %s160 = scalar_lea.hbm %s2, %s159
          %s161 = sshll.u32 %s160, 4
          %s162 = int_to_ptr.hbm [resolvable:$true] %s161
          %s163 = sshll.u32 %s154, 4
          %s164 = int_to_ptr.vmem [resolvable:$true] %s163
          %169 = dma.hbm_to_vmem [thread:$0]  %s162, 2048, %s164, %s151, 128, 128, 8
        $region24: #{tpu_custom_call.1} parent=15 // pred_fallthru
          _
      $region16: #{tpu_custom_call.1} parent=5 // pred_fallthru
        _
      %p170 = scmp.le.s32.totalorder 1, %s26
      %p171 = scmp.lt.s32.totalorder %s26, 4
      %p172 = pnand %p170, %p171
      %p173 = pneg %p172
      // Predicated region
      $region25: #{tpu_custom_call.1} parent=5 // pred_check
        _
      $region26: #{tpu_custom_call.1} parent=5 // pred_check_branch
        %175 = sbr.rel (%p172) target = $region28
      $region27: #{tpu_custom_call.1} parent=5 // pred_region
        %s176 = ssub.s32 %s26, 1
        %s177 = sand.u32 %s39, 1
        %s178 = scalar_lea.sflag [#allocation5], %s177
        %s179 = sand.u32 %s39, 1
        %s180 = smul.addr %s179, 24
        %s181 = scalar_lea.vmem [#allocation4], %s180
        // Predicated region
        $region29: #{tpu_custom_call.1} parent=27 // pred_check
          %p182 = pneg %p52
        $region30: #{tpu_custom_call.1} parent=27 // pred_check_branch
          %184 = sbr.rel (%p182) target = $region32
        $region31: #{tpu_custom_call.1} parent=27 // pred_region
          %186 = dma.done %s178, 384
        $region32: #{tpu_custom_call.1} parent=27 // pred_fallthru
          _
        %s187 = sand.u32 %s67, 1
        %s188 = scalar_lea.sflag [#allocation8], %s187
        %s189 = sand.u32 %s67, 1
        %s190 = smul.addr %s189, 128
        %s191 = scalar_lea.vmem [#allocation7], %s190
        // Predicated region
        $region33: #{tpu_custom_call.1} parent=27 // pred_check
          %p192 = pneg %p80
        $region34: #{tpu_custom_call.1} parent=27 // pred_check_branch
          %194 = sbr.rel (%p192) target = $region36
        $region35: #{tpu_custom_call.1} parent=27 // pred_region
          %196 = dma.done %s188, 2048
        $region36: #{tpu_custom_call.1} parent=27 // pred_fallthru
          _
        %s197 = sand.u32 %s39, 1
        %s198 = scalar_lea.sflag [#allocation5], %s197
        %s199 = sand.u32 %s39, 1
        %s200 = smul.addr %s199, 24
        %s201 = scalar_lea.vmem [#allocation4], %s200
        %p202 = pneg %p52
        %p203 = pneg %p49
        %s204 = sand.u32 %s67, 1
        %s205 = scalar_lea.sflag [#allocation8], %s204
        %s206 = sand.u32 %s67, 1
        %s207 = smul.addr %s206, 128
        %s208 = scalar_lea.vmem [#allocation7], %s207
        %p209 = pneg %p80
        %p210 = pneg %p77
        %p211 = pneg %p106
        %p212 = pneg %p103
        %s213 = sand.u32 %s93, 1
        %s214 = scalar_lea.sflag [#allocation6], %s213
        %s215 = sand.u32 %s93, 1
        %s216 = smul.addr %s215, 24
        %s217 = scalar_lea.vmem [#allocation9], %s216
        %s218 = smul.u32 3, %s31
        %s219 = sld [smem:[#allocation3 + %s31]]
        %s220 = smul.u32 3, %s31
        %v221 = vld [vmem:[%s181] sm:$0xff]
        %v222 = vld [vmem:[%s181 + $0x8] sm:$0xff]
        %v223 = vld [vmem:[%s181 + $0x10] sm:$0xff]
        %v224 = vld [vmem:[%s191] sm:$0xff]
        %v225 = vld [vmem:[%s191 + $0x8] sm:$0xff]
        %v226 = vld [vmem:[%s191 + $0x10] sm:$0xff]
        %v227 = vld [vmem:[%s191 + $0x18] sm:$0xff]
        %v228 = vld [vmem:[%s191 + $0x20] sm:$0xff]
        %v229 = vld [vmem:[%s191 + $0x28] sm:$0xff]
        %v230 = vld [vmem:[%s191 + $0x30] sm:$0xff]
        %v231 = vld [vmem:[%s191 + $0x38] sm:$0xff]
        %v232 = vld [vmem:[%s191 + $0x40] sm:$0xff]
        %v233 = vld [vmem:[%s191 + $0x48] sm:$0xff]
        %v234 = vld [vmem:[%s191 + $0x50] sm:$0xff]
        %v235 = vld [vmem:[%s191 + $0x58] sm:$0xff]
        %v236 = vld [vmem:[%s191 + $0x60] sm:$0xff]
        %v237 = vld [vmem:[%s191 + $0x68] sm:$0xff]
        %v238 = vld [vmem:[%s191 + $0x70] sm:$0xff]
        %v239 = vld [vmem:[%s191 + $0x78] sm:$0xff]
        %240 = vmatpush.msra.mxu0 %v239
        %241 = vmatpush.msra.mxu0 %v238
        %242 = vmatpush.msra.mxu0 %v237
        %243 = vmatpush.msra.mxu0 %v236
        %244 = vmatpush.msra.mxu0 %v235
        %245 = vmatpush.msra.mxu0 %v234
        %246 = vmatpush.msra.mxu0 %v233
        %247 = vmatpush.msra.mxu0 %v232
        %248 = vmatpush.msra.mxu0 %v231
        %249 = vmatpush.msra.mxu0 %v230
        %250 = vmatpush.msra.mxu0 %v229
        %251 = vmatpush.msra.mxu0 %v228
        %252 = vmatpush.msra.mxu0 %v227
        %253 = vmatpush.msra.mxu0 %v226
        %254 = vmatpush.msra.mxu0 %v225
        %255 = vmatpush.msra.mxu0 %v224
        %256 = vmatmul.f32.gmra.mxu0 %v221
        %v257 = vpop.f32.mrf.mxu0
        %v258 = vadd.f32 0.0, %v257
        %259 = vmatmul.f32.gmra.mxu0 %v222
        %v260 = vpop.f32.mrf.mxu0
        %v261 = vadd.f32 0.0, %v260
        %262 = vmatmul.f32.gmra.mxu0 %v223
        %v263 = vpop.f32.mrf.mxu0
        %v264 = vadd.f32 0.0, %v263
        %265 = vdwg.mxu0
        %266 = vst [vmem:[%s217] sm:$0xff] %v258
        %267 = vst [vmem:[%s217 + $0x8] sm:$0xff] %v261
        %268 = vst [vmem:[%s217 + $0x10] sm:$0xff] %v264
        %s269 = sand.u32 %s93, 1
        %s270 = scalar_lea.sflag [#allocation6], %s269
        %s271 = sand.u32 %s93, 1
        %s272 = smul.addr %s271, 24
        %s273 = scalar_lea.vmem [#allocation9], %s272
        // Predicated region
        $region37: #{tpu_custom_call.1} parent=27 // pred_check
          %p274 = pneg %p103
        $region38: #{tpu_custom_call.1} parent=27 // pred_check_branch
          %276 = sbr.rel (%p274) target = $region40
        $region39: #{tpu_custom_call.1} parent=27 // pred_region
          %s277 = smul.u32 3, %s31
          %279 = vsyncadd %s270, 0
          %s280 = smul.addr %s277, 8
          %s281 = scalar_lea.hbm %s3, %s280
          %s282 = sshll.u32 %s273, 4
          %s283 = int_to_ptr.vmem [resolvable:$true] %s282
          %s284 = sshll.u32 %s281, 4
          %s285 = int_to_ptr.hbm [resolvable:$true] %s284
          %290 = dma.vmem_to_hbm [thread:$0]  %s283, 384, %s285, %s270, 128, 128, 8
        $region40: #{tpu_custom_call.1} parent=27 // pred_fallthru
          _
      $region28: #{tpu_custom_call.1} parent=5 // pred_fallthru
        _
      %p291 = scmp.le.s32.totalorder 2, %s26
      // Predicated region
      $region41: #{tpu_custom_call.1} parent=5 // pred_check
        %p292 = pneg %p291
      $region42: #{tpu_custom_call.1} parent=5 // pred_check_branch
        %294 = sbr.rel (%p292) target = $region44
      $region43: #{tpu_custom_call.1} parent=5 // pred_region
        %s295 = ssub.s32 %s26, 2
        // Predicated region
        $region45: #{tpu_custom_call.1} parent=43 // pred_check
          %p296 = pneg %p109
        $region46: #{tpu_custom_call.1} parent=43 // pred_check_branch
          %298 = sbr.rel (%p296) target = $region48
        $region47: #{tpu_custom_call.1} parent=43 // pred_region
          %s299 = sand.u32 %s94, 1
          %s300 = scalar_lea.sflag [#allocation6], %s299
          %s301 = sand.u32 %s94, 1
          %s302 = smul.addr %s301, 24
          %s303 = scalar_lea.vmem [#allocation9], %s302
          %305 = dma.done %s300, 384
        $region48: #{tpu_custom_call.1} parent=43 // pred_fallthru
          _
      $region44: #{tpu_custom_call.1} parent=5 // pred_fallthru
        _
    $region6: #{tpu_custom_call.1} parent=1 // loop_footer
      %s30 = sadd.s32 1, %s26
    $region7: #{tpu_custom_call.1} parent=1 // loop_footer_branch
      %25 = sbr.rel target = $region3
    $region8: #{tpu_custom_call.1} parent=1 // loop_exit
      _
    %306 = vsyncpa [#allocation5], 1
    %s307 = scalar_lea.sflag [#allocation5], 1
    %308 = vsyncpa %s307, 1
    %309 = vsyncpa [#allocation8], 1
    %s310 = scalar_lea.sflag [#allocation8], 1
    %311 = vsyncpa %s310, 1
    %312 = vsyncpa [#allocation6], 1
    %s313 = scalar_lea.sflag [#allocation6], 1
    %314 = vsyncpa %s313, 1

</llo_original>
